<compile_context>
chip_gen: v7x
topology: tpu7x:2x2x1
jax: 0.10.0
libtpu: 0.0.40
codegen_flags: <defaults>
</compile_context>

<pallas_src>
import jax
import jax.numpy as jnp
from jax.experimental import pallas as pl
from jax.experimental.pallas import tpu as pltpu

_LANE = 128
_DEFAULT_BLOCK_B = 512


def _round_up(n, m):
    return ((n + m - 1) // m) * m


def _pad_to(a, shape, value=0):
    pads = [(0, t - s) for s, t in zip(a.shape, shape)]
    if any(p[1] for p in pads):
        return jnp.pad(a, pads, constant_values=value)
    return a


def _pick_batch_tile(batch, block_b):
    """Batch-tile rows.  Large batches use block_b (512 reaches ~85% of the
    HBM roofline per measured pipelining data) but keep >=2-4 grid steps so
    double-buffering and v7x's 2-TC grid sharding still overlap DMA."""
    if batch >= block_b:
        tb = block_b
        while tb > 256 and _round_up(batch, tb) // tb < 4:
            tb //= 2
        return tb
    # Single-step case: round to 32 rows so int8-mask / bf16-activation tiles
    # are always layout-legal even if they are not full-array blocks.
    return _round_up(max(batch, 1), 32)


def padded_dims(batch, in_features, *, block_b=_DEFAULT_BLOCK_B):
    """(B_p, F_in_p, tb) used by dae_forward.  Generate the noise mask at this
    shape to avoid any wrapper-side pad pass over the mask."""
    tb = _pick_batch_tile(batch, block_b)
    return _round_up(batch, tb), _round_up(in_features, _LANE), tb


def dae_kernel(x_ref, mask_ref, w_enc_ref, b_enc_ref, w_dec_ref, b_dec_ref, out_ref):
    # _add_noise: multiply by the 0/1 mask.  int8 -> f32 upcast and the
    # multiply run on the VPU in f32 (v5e has no bf16 VPU; cast hides under DMA).
    x = x_ref[...].astype(jnp.float32) * mask_ref[...].astype(jnp.float32)

    # encoder: Linear(in -> out) + Sigmoid.  Only the dot operands are narrowed
    # to the weight dtype (bf16 by default); accumulation + bias stay f32.
    h = jnp.dot(x.astype(w_enc_ref.dtype), w_enc_ref[...],
                preferred_element_type=jnp.float32) + b_enc_ref[...]
    h = jax.nn.sigmoid(h)  # EUP

    # decoder: Linear(out -> in) + Sigmoid.
    y = jnp.dot(h.astype(w_dec_ref.dtype), w_dec_ref[...],
                preferred_element_type=jnp.float32) + b_dec_ref[...]
    y = jax.nn.sigmoid(y)

    out_ref[...] = y.astype(out_ref.dtype)


def make_noise_mask(key, batch_size, num_features, noise_ratio=0.1, *,
                    rows=None, cols=None, dtype=jnp.int8):
    """Per-row noise mask: exactly int(num_features*noise_ratio) features of
    each row are zeroed (mirrors the PyTorch per-row randperm[:num_noisy]).

    Emitted directly at the padded (rows, cols) shape and as int8, so the
    kernel's mask stream is 1 B/elem and needs no wrapper-side pad pass.
    """
    # TODO(synk): exact-count random index selection has no cheap in-kernel
    # equivalent (needs a per-row top_k), so the mask is built in JAX glue;
    # the masking multiply itself runs inside the Pallas kernel.
    rows = batch_size if rows is None else rows
    cols = num_features if cols is None else cols
    num_noisy = int(num_features * noise_ratio)
    if num_noisy == 0:
        return jnp.ones((rows, cols), dtype)
    u = jax.random.uniform(key, (rows, cols), jnp.float32)
    if cols != num_features:
        col_idx = jax.lax.broadcasted_iota(jnp.int32, (rows, cols), 1)
        u = jnp.where(col_idx < num_features, u, 2.0)  # padded cols never zeroed
    # kth-smallest per row; exactly num_noisy entries are <= it
    # (ties have probability ~0 for f32 uniforms).
    kth = -jax.lax.top_k(-u, num_noisy)[0][:, -1:]
    return (u > kth).astype(dtype)


def dae_forward(x, mask, w_enc, b_enc, w_dec, b_dec, *,
                block_b=_DEFAULT_BLOCK_B, mxu_dtype=jnp.bfloat16,
                single_buffer_weights=False):
    """Batch-tiled, lane-dense Pallas forward.

    `mask` may be (B, F_in) or already padded to (B_p, F_in_p) (as produced by
    make_noise_mask(..., rows=B_p, cols=F_in_p)); the latter skips all mask
    padding.  `mxu_dtype` narrows only the matmul operands (bf16 default for
    v6e/v7x; pass jnp.float32 for exact f32)."""
    B, F_in = x.shape
    F_out = w_enc.shape[1]
    B_p, F_in_p, tb = padded_dims(B, F_in, block_b=block_b)
    F_out_p = _round_up(F_out, _LANE)

    w_dtype = jnp.dtype(jnp.float32 if mxu_dtype is None else mxu_dtype)

    # x: pad only when not already tile/lane aligned (store x padded upstream
    # to make this a no-op for large inputs).
    x_p = _pad_to(x, (B_p, F_in_p))

    if mask.shape == (B_p, F_in_p):
        mask_p = mask.astype(jnp.int8)
    else:
        assert mask.shape == (B, F_in), f"unexpected mask shape {mask.shape}"
        mask_p = _pad_to(mask.astype(jnp.int8), (B_p, F_in_p))

    # Zero-padding of the weights keeps the padded math exact: padded F_out
    # columns of h become sigmoid(0)=0.5 but hit zero rows of w_dec.
    w_enc_p = _pad_to(w_enc, (F_in_p, F_out_p)).astype(w_dtype)
    b_enc_p = _pad_to(b_enc, (1, F_out_p)).astype(jnp.float32)
    w_dec_p = _pad_to(w_dec, (F_out_p, F_in_p)).astype(w_dtype)
    b_dec_p = _pad_to(b_dec, (1, F_in_p)).astype(jnp.float32)

    grid = (B_p // tb,)

    x_bytes = jnp.dtype(x_p.dtype).itemsize
    w_bytes = w_dtype.itemsize
    cost = pl.CostEstimate(
        flops=2 * B_p * (F_in_p * F_out_p + F_out_p * F_in_p),
        transcendentals=B_p * (F_out_p + F_in_p),
        bytes_accessed=(
            B_p * F_in_p * (x_bytes + 1 + 4)          # x, int8 mask, f32 out
            + 2 * F_in_p * F_out_p * w_bytes          # w_enc, w_dec
            + (F_out_p + F_in_p) * 4                  # biases
        ),
    )

    # Scoped-VMEM limit from the actual footprint (2 pipeline buffers for the
    # streamed tiles + resident weights/biases).  Keeps larger tiles compiling
    # under v5e's 16 MiB scoped default and inside v7x's 64 MiB physical VMEM.
    est_vmem = (2 * tb * F_in_p * (x_bytes + 1 + 4)
                + 2 * 2 * F_in_p * F_out_p * w_bytes
                + 2 * (F_out_p + F_in_p) * 4)
    vmem_limit = int(min(max(2 * est_vmem, 16 << 20), 48 << 20))

    def resident(shape):
        # Weights/biases use a constant index_map so they stay in VMEM across
        # all grid steps; optionally single-buffer them to free VMEM for
        # larger activation tiles at non-toy feature dims (v5e/v7x).
        kw = {"pipeline_mode": pl.Buffered(1)} if single_buffer_weights else {}
        return pl.BlockSpec(shape, lambda i: (0, 0), **kw)

    out_p = pl.pallas_call(
        dae_kernel,
        out_shape=jax.ShapeDtypeStruct((B_p, F_in_p), jnp.float32),
        grid_spec=pltpu.PrefetchScalarGridSpec(
            num_scalar_prefetch=0,
            grid=grid,
            in_specs=[
                pl.BlockSpec((tb, F_in_p), lambda i: (i, 0)),   # x tile (streamed)
                pl.BlockSpec((tb, F_in_p), lambda i: (i, 0)),   # int8 mask tile
                resident((F_in_p, F_out_p)),                    # w_enc
                resident((1, F_out_p)),                         # b_enc
                resident((F_out_p, F_in_p)),                    # w_dec
                resident((1, F_in_p)),                          # b_dec
            ],
            out_specs=pl.BlockSpec((tb, F_in_p), lambda i: (i, 0)),
        ),
        compiler_params=pltpu.CompilerParams(
            dimension_semantics=("parallel",),   # megacore on v7x; no-op v5e/v6e
            vmem_limit_bytes=vmem_limit,
        ),
        cost_estimate=cost,
    )(x_p, mask_p, w_enc_p, b_enc_p, w_dec_p, b_dec_p)

    return out_p[:B, :F_in]


def init_params(key, in_features, out_features):
    """Deterministic init mirroring nn.Linear's U(-1/sqrt(fan_in), 1/sqrt(fan_in))."""
    k1, k2, k3, k4 = jax.random.split(key, 4)
    lim_enc = 1.0 / jnp.sqrt(in_features)
    lim_dec = 1.0 / jnp.sqrt(out_features)
    # weights stored already transposed: y = x @ W_T + b
    w_enc = jax.random.uniform(k1, (in_features, out_features), jnp.float32,
                               -lim_enc, lim_enc)
    b_enc = jax.random.uniform(k2, (1, out_features), jnp.float32, -lim_enc, lim_enc)
    w_dec = jax.random.uniform(k3, (out_features, in_features), jnp.float32,
                               -lim_dec, lim_dec)
    b_dec = jax.random.uniform(k4, (1, in_features), jnp.float32, -lim_dec, lim_dec)
    return w_enc, b_enc, w_dec, b_dec


def _reference(x, mask, w_enc, b_enc, w_dec, b_dec):
    return jax.nn.sigmoid(
        jax.nn.sigmoid((x * mask) @ w_enc + b_enc) @ w_dec + b_dec)


if __name__ == "__main__":
    in_features = 64
    out_features = 32
    batch = 8

    root = jax.random.PRNGKey(0)
    k_x, k_mask, k_params, k_x2, k_mask2 = jax.random.split(root, 5)

    w_enc, b_enc, w_dec, b_dec = init_params(k_params, in_features, out_features)

    # --- small batch, exact-f32 MXU path, single grid step --------------------
    B_p, F_in_p, _tb = padded_dims(batch, in_features)
    x = jax.random.normal(k_x, (batch, in_features), dtype=jnp.float32)
    mask = make_noise_mask(k_mask, batch, in_features, noise_ratio=0.1,
                           rows=B_p, cols=F_in_p)
    out = dae_forward(x, mask, w_enc, b_enc, w_dec, b_dec, mxu_dtype=jnp.float32)
    out = jax.block_until_ready(out)
    ref = _reference(x, mask[:batch, :in_features].astype(jnp.float32),
                     w_enc, b_enc, w_dec, b_dec)
    assert out.shape == (batch, in_features)
    assert jnp.allclose(out, ref, atol=1e-5), "mismatch vs. reference (small, f32)"

    # --- larger batch, default bf16 MXU path, multi-step pipelined grid -------
    big_batch = 2048  # 4 grid steps at tb=512
    B_p2, F_in_p2, _tb2 = padded_dims(big_batch, in_features)
    x2 = jax.random.normal(k_x2, (big_batch, in_features), dtype=jnp.float32)
    mask2 = make_noise_mask(k_mask2, big_batch, in_features, noise_ratio=0.1,
                            rows=B_p2, cols=F_in_p2)
    out2 = dae_forward(x2, mask2, w_enc, b_enc, w_dec, b_dec)   # bf16 MXU default
    out2 = jax.block_until_ready(out2)
    ref2 = _reference(x2, mask2[:big_batch, :in_features].astype(jnp.float32),
                      w_enc, b_enc, w_dec, b_dec)
    assert out2.shape == (big_batch, in_features)
    # bf16 matmul inputs, f32 accumulation -> small output delta only.
    assert jnp.allclose(out2, ref2, atol=3e-2), "mismatch vs. reference (large, bf16)"

    print("KERNEL_OK")
</pallas_src>

<mosaic_0001>
module attributes {stable_mosaic.version = 11 : i64} {
  func.func @dae_kernel(%arg0: i32, %arg1: memref<32x128xf32, #tpu.memory_space<vmem>>, %arg2: memref<32x128xi8, #tpu.memory_space<vmem>>, %arg3: memref<128x128xf32, #tpu.memory_space<vmem>>, %arg4: memref<1x128xf32, #tpu.memory_space<vmem>>, %arg5: memref<128x128xf32, #tpu.memory_space<vmem>>, %arg6: memref<1x128xf32, #tpu.memory_space<vmem>>, %arg7: memref<32x128xf32, #tpu.memory_space<vmem>>) attributes {dimension_semantics = [#tpu.dimension_semantics<parallel>], iteration_bounds = array<i64: 1>, scalar_prefetch = 0 : i64, scratch_operands = 0 : i64, tpu.core_type = #tpu.core_type<tc>, window_params = [{transform_indices = @transform_0, window_bounds = array<i64: 32, 128>}, {transform_indices = @transform_1, window_bounds = array<i64: 32, 128>}, {pipeline_mode = #tpu.pipeline_mode<synchronous>, transform_indices = @transform_2, window_bounds = array<i64: 128, 128>}, {pipeline_mode = #tpu.pipeline_mode<synchronous>, transform_indices = @transform_3, window_bounds = array<i64: 1, 128>}, {pipeline_mode = #tpu.pipeline_mode<synchronous>, transform_indices = @transform_4, window_bounds = array<i64: 128, 128>}, {pipeline_mode = #tpu.pipeline_mode<synchronous>, transform_indices = @transform_5, window_bounds = array<i64: 1, 128>}, {transform_indices = @transform_6, window_bounds = array<i64: 32, 128>}]} {
    %c0 = arith.constant 0 : index
    %c0_0 = arith.constant 0 : index
    %0 = vector.load %arg1[%c0, %c0_0] : memref<32x128xf32, #tpu.memory_space<vmem>>, vector<32x128xf32>
    %c0_1 = arith.constant 0 : index
    %c0_2 = arith.constant 0 : index
    %1 = vector.load %arg2[%c0_1, %c0_2] : memref<32x128xi8, #tpu.memory_space<vmem>>, vector<32x128xi8>
    %2 = arith.sitofp %1 : vector<32x128xi8> to vector<32x128xf32>
    %3 = arith.mulf %0, %2 : vector<32x128xf32>
    %c0_3 = arith.constant 0 : index
    %c0_4 = arith.constant 0 : index
    %4 = vector.load %arg3[%c0_3, %c0_4] : memref<128x128xf32, #tpu.memory_space<vmem>>, vector<128x128xf32>
    %cst = arith.constant dense<0.000000e+00> : vector<32x128xf32>
    %5 = tpu.matmul %3, %4, %cst {dimension_numbers = #tpu.dot_dimension_numbers<[1], [0], [0], [1], [0, 0, 1, 1], [], []>} : vector<32x128xf32>, vector<128x128xf32>, vector<32x128xf32> -> vector<32x128xf32>
    %c0_5 = arith.constant 0 : index
    %c0_6 = arith.constant 0 : index
    %6 = vector.load %arg4[%c0_5, %c0_6] : memref<1x128xf32, #tpu.memory_space<vmem>>, vector<1x128xf32>
    %7 = vector.broadcast %6 : vector<1x128xf32> to vector<32x128xf32>
    %8 = arith.addf %5, %7 : vector<32x128xf32>
    %9 = arith.negf %8 : vector<32x128xf32>
    %10 = math.exp %9 : vector<32x128xf32>
    %cst_7 = arith.constant 1.000000e+00 : f32
    %11 = vector.broadcast %cst_7 : f32 to vector<32x128xf32>
    %12 = arith.addf %11, %10 : vector<32x128xf32>
    %13 = arith.divf %11, %12 : vector<32x128xf32>
    %c0_8 = arith.constant 0 : index
    %c0_9 = arith.constant 0 : index
    %14 = vector.load %arg5[%c0_8, %c0_9] : memref<128x128xf32, #tpu.memory_space<vmem>>, vector<128x128xf32>
    %cst_10 = arith.constant dense<0.000000e+00> : vector<32x128xf32>
    %15 = tpu.matmul %13, %14, %cst_10 {dimension_numbers = #tpu.dot_dimension_numbers<[1], [0], [0], [1], [0, 0, 1, 1], [], []>} : vector<32x128xf32>, vector<128x128xf32>, vector<32x128xf32> -> vector<32x128xf32>
    %c0_11 = arith.constant 0 : index
    %c0_12 = arith.constant 0 : index
    %16 = vector.load %arg6[%c0_11, %c0_12] : memref<1x128xf32, #tpu.memory_space<vmem>>, vector<1x128xf32>
    %17 = vector.broadcast %16 : vector<1x128xf32> to vector<32x128xf32>
    %18 = arith.addf %15, %17 : vector<32x128xf32>
    %19 = arith.negf %18 : vector<32x128xf32>
    %20 = math.exp %19 : vector<32x128xf32>
    %cst_13 = arith.constant 1.000000e+00 : f32
    %21 = vector.broadcast %cst_13 : f32 to vector<32x128xf32>
    %22 = arith.addf %21, %20 : vector<32x128xf32>
    %23 = arith.divf %21, %22 : vector<32x128xf32>
    %c0_14 = arith.constant 0 : index
    %c0_15 = arith.constant 0 : index
    %24 = vector.load %arg7[%c0_14, %c0_15] : memref<32x128xf32, #tpu.memory_space<vmem>>, vector<32x128xf32>
    tpu.vector_store %arg7[%c0_14, %c0_15], %23 {strides = array<i32>} : memref<32x128xf32, #tpu.memory_space<vmem>>, vector<32x128xf32>,
    return
  }
  func.func @transform_0(%arg0: i32) -> (i32, i32) {
    %c0_i32 = arith.constant 0 : i32
    %c0_i32_0 = arith.constant 0 : i32
    return %arg0, %c0_i32 : i32, i32
  }
  func.func @transform_1(%arg0: i32) -> (i32, i32) {
    %c0_i32 = arith.constant 0 : i32
    %c0_i32_0 = arith.constant 0 : i32
    return %arg0, %c0_i32 : i32, i32
  }
  func.func @transform_2(%arg0: i32) -> (i32, i32) {
    %c0_i32 = arith.constant 0 : i32
    %c0_i32_0 = arith.constant 0 : i32
    %c0_i32_1 = arith.constant 0 : i32
    return %c0_i32, %c0_i32_0 : i32, i32
  }
  func.func @transform_3(%arg0: i32) -> (i32, i32) {
    %c0_i32 = arith.constant 0 : i32
    %c0_i32_0 = arith.constant 0 : i32
    %c0_i32_1 = arith.constant 0 : i32
    return %c0_i32, %c0_i32_0 : i32, i32
  }
  func.func @transform_4(%arg0: i32) -> (i32, i32) {
    %c0_i32 = arith.constant 0 : i32
    %c0_i32_0 = arith.constant 0 : i32
    %c0_i32_1 = arith.constant 0 : i32
    return %c0_i32, %c0_i32_0 : i32, i32
  }
  func.func @transform_5(%arg0: i32) -> (i32, i32) {
    %c0_i32 = arith.constant 0 : i32
    %c0_i32_0 = arith.constant 0 : i32
    %c0_i32_1 = arith.constant 0 : i32
    return %c0_i32, %c0_i32_0 : i32, i32
  }
  func.func @transform_6(%arg0: i32) -> (i32, i32) {
    %c0_i32 = arith.constant 0 : i32
    %c0_i32_0 = arith.constant 0 : i32
    return %arg0, %c0_i32 : i32, i32
  }
}

</mosaic_0001>

<llo_original>
// kernel: tpu_custom_call.1
$region0: #{tpu_custom_call.1}
  #allocation0 [shape = 'u32[]', space=smem, size = 0x4, offset = 0x4, fixed_abs, tag = 'smem constant byte address 0x4 - core index']
  #allocation1 [shape = 'u32[144,128]{1,0:T(1,128)}', space=vmem, size = 0x12000, scoped, tag = 'internal scratch']
  %s0 = inlined_call_operand.hbm [shape: f32[32,128], index: 0, kind: input, shape index: {}]
  %s1 = inlined_call_operand.hbm [shape: s8[32,128], index: 1, kind: input, shape index: {}]
  %s2 = inlined_call_operand.hbm [shape: f32[128,128], index: 2, kind: input, shape index: {}]
  %s3 = inlined_call_operand.vmem [shape: f32[1,128], index: 3, kind: input, shape index: {}]
  %s4 = inlined_call_operand.hbm [shape: f32[128,128], index: 4, kind: input, shape index: {}]
  %s5 = inlined_call_operand.vmem [shape: f32[1,128], index: 5, kind: input, shape index: {}]
  %s6 = inlined_call_operand.hbm [shape: f32[32,128], index: 6, kind: output, shape index: {}]
  %s7 = sld [smem:[#allocation0]]
  $region50: #{tpu_custom_call.1} parent=0
    _
  %s9 = ssub.s32 1, %s7
  %s10 = scalar_select 0, %s9, %s7
  $region1: #{tpu_custom_call.1} parent=0
    #allocation2 [shape = 'u8[16384]{0}', space=vmem, size = 0x4000, scoped, tag = 'input window, operand 0, single buffered']
    #allocation3 [shape = 's32[1]{0}', space=sflag, size = 0x4, scoped, tag = 'scoped memory for tpu_custom_call.1']
    #allocation4 [shape = 's32[1]{0}', space=sflag, size = 0x4, scoped, tag = 'scoped memory for tpu_custom_call.1']
    #allocation5 [shape = 'u8[4096]{0}', space=vmem, size = 0x1000, scoped, tag = 'input window, operand 1, single buffered']
    #allocation6 [shape = 's32[1]{0}', space=sflag, size = 0x4, scoped, tag = 'scoped memory for tpu_custom_call.1']
    #allocation7 [shape = 'u8[65536]{0}', space=vmem, size = 0x10000, scoped, tag = 'input window, operand 2, single buffered']
    #allocation8 [shape = 'u8[65536]{0}', space=vmem, size = 0x10000, scoped, tag = 'input window, operand 4, single buffered']
    #allocation9 [shape = 's32[1]{0}', space=sflag, size = 0x4, scoped, tag = 'scoped memory for tpu_custom_call.1']
    #allocation10 [shape = 'u8[16384]{0}', space=vmem, size = 0x4000, scoped, tag = 'output window, operand 0, single buffered']
    %11 = vsyncpa [#allocation3], 0
    %12 = vsyncpa [#allocation6], 0
    %13 = vsyncpa [#allocation9], 0
    %14 = vsyncpa [#allocation4], 0
    // Predicated region
    $region2: #{tpu_custom_call.1} parent=1 // pred_check
      _
    $region3: #{tpu_custom_call.1} parent=1 // pred_check_branch
      %16 = sbr.rel (0) target = $region5
    $region4: #{tpu_custom_call.1} parent=1 // pred_region
      %s18 = ssub.s32 512, 512
      %19 = vsyncadd [#allocation3], %s18
      %s20 = sshll.u32 [#allocation2], 4
      %s21 = int_to_ptr.vmem [resolvable:$true] %s20
      %26 = dma.hbm_to_vmem [thread:$0]  %s0, 512, %s21, [#allocation3], 128, 128, 8
    $region5: #{tpu_custom_call.1} parent=1 // pred_fallthru
      _
    // Predicated region
    $region6: #{tpu_custom_call.1} parent=1 // pred_check
      _
    $region7: #{tpu_custom_call.1} parent=1 // pred_check_branch
      %28 = sbr.rel (0) target = $region9
    $region8: #{tpu_custom_call.1} parent=1 // pred_region
      %s30 = ssub.s32 128, 128
      %31 = vsyncadd [#allocation6], %s30
      %s33 = sshll.u32 [#allocation5], 4
      %s34 = int_to_ptr.vmem [resolvable:$true] %s33
      %36 = dma.hbm_to_vmem [thread:$0]  %s1, 128, %s34, [#allocation6]
    $region9: #{tpu_custom_call.1} parent=1 // pred_fallthru
      _
    // Predicated region
    $region10: #{tpu_custom_call.1} parent=1 // pred_check
      _
    $region11: #{tpu_custom_call.1} parent=1 // pred_check_branch
      %38 = sbr.rel (0) target = $region13
    $region12: #{tpu_custom_call.1} parent=1 // pred_region
      %s40 = ssub.s32 2048, 2048
      %41 = vsyncadd [#allocation6], %s40
      %s42 = sshll.u32 [#allocation7], 4
      %s43 = int_to_ptr.vmem [resolvable:$true] %s42
      %48 = dma.hbm_to_vmem [thread:$0]  %s2, 2048, %s43, [#allocation6], 128, 128, 8
    $region13: #{tpu_custom_call.1} parent=1 // pred_fallthru
      _
    // Predicated region
    $region14: #{tpu_custom_call.1} parent=1 // pred_check
      _
    $region15: #{tpu_custom_call.1} parent=1 // pred_check_branch
      %50 = sbr.rel (0) target = $region17
    $region16: #{tpu_custom_call.1} parent=1 // pred_region
      _
    $region17: #{tpu_custom_call.1} parent=1 // pred_fallthru
      _
    // Predicated region
    $region18: #{tpu_custom_call.1} parent=1 // pred_check
      _
    $region19: #{tpu_custom_call.1} parent=1 // pred_check_branch
      %52 = sbr.rel (0) target = $region21
    $region20: #{tpu_custom_call.1} parent=1 // pred_region
      %s54 = ssub.s32 2048, 2048
      %55 = vsyncadd [#allocation9], %s54
      %s56 = sshll.u32 [#allocation8], 4
      %s57 = int_to_ptr.vmem [resolvable:$true] %s56
      %62 = dma.hbm_to_vmem [thread:$0]  %s4, 2048, %s57, [#allocation9], 128, 128, 8
    $region21: #{tpu_custom_call.1} parent=1 // pred_fallthru
      _
    // Predicated region
    $region22: #{tpu_custom_call.1} parent=1 // pred_check
      _
    $region23: #{tpu_custom_call.1} parent=1 // pred_check_branch
      %64 = sbr.rel (0) target = $region25
    $region24: #{tpu_custom_call.1} parent=1 // pred_region
      _
    $region25: #{tpu_custom_call.1} parent=1 // pred_fallthru
      _
    // Predicated region
    $region26: #{tpu_custom_call.1} parent=1 // pred_check
      _
    $region27: #{tpu_custom_call.1} parent=1 // pred_check_branch
      %66 = sbr.rel (0) target = $region29
    $region28: #{tpu_custom_call.1} parent=1 // pred_region
      %67 = dma.done [#allocation3], 512
    $region29: #{tpu_custom_call.1} parent=1 // pred_fallthru
      _
    // Predicated region
    $region30: #{tpu_custom_call.1} parent=1 // pred_check
      _
    $region31: #{tpu_custom_call.1} parent=1 // pred_check_branch
      %69 = sbr.rel (0) target = $region33
    $region32: #{tpu_custom_call.1} parent=1 // pred_region
      %70 = dma.done [#allocation6], 128
    $region33: #{tpu_custom_call.1} parent=1 // pred_fallthru
      _
    // Predicated region
    $region34: #{tpu_custom_call.1} parent=1 // pred_check
      _
    $region35: #{tpu_custom_call.1} parent=1 // pred_check_branch
      %72 = sbr.rel (0) target = $region37
    $region36: #{tpu_custom_call.1} parent=1 // pred_region
      %73 = dma.done [#allocation6], 2048
    $region37: #{tpu_custom_call.1} parent=1 // pred_fallthru
      _
    // Predicated region
    $region38: #{tpu_custom_call.1} parent=1 // pred_check
      _
    $region39: #{tpu_custom_call.1} parent=1 // pred_check_branch
      %75 = sbr.rel (0) target = $region41
    $region40: #{tpu_custom_call.1} parent=1 // pred_region
      %76 = dma.done [#allocation9], 2048
    $region41: #{tpu_custom_call.1} parent=1 // pred_fallthru
      _
    %v77 = vld [vmem:[#allocation2] sm:$0xff]
    %v78 = vld [vmem:[#allocation2 + $0x8] sm:$0xff]
    %v79 = vld [vmem:[#allocation2 + $0x10] sm:$0xff]
    %v80 = vld [vmem:[#allocation2 + $0x18] sm:$0xff]
    %v81 = vld [vmem:[#allocation5] sm:$0xff]
    %v82 = vunpack.c.0.s8 %v81
    %v83 = vunpack.c.1.s8 %v81
    %v84 = vunpack.c.2.s8 %v81
    %v85 = vunpack.c.3.s8 %v81
    %v86 = vcvt.s32.f32 %v82
    %v87 = vcvt.s32.f32 %v83
    %v88 = vcvt.s32.f32 %v84
    %v89 = vcvt.s32.f32 %v85
    %v90 = vmul.f32 %v77, %v86
    %v91 = vmul.f32 %v78, %v87
    %v92 = vmul.f32 %v79, %v88
    %v93 = vmul.f32 %v80, %v89
    %v94 = vld [vmem:[#allocation7] sm:$0xff]
    %v95 = vld [vmem:[#allocation7 + $0x8] sm:$0xff]
    %v96 = vld [vmem:[#allocation7 + $0x10] sm:$0xff]
    %v97 = vld [vmem:[#allocation7 + $0x18] sm:$0xff]
    %v98 = vld [vmem:[#allocation7 + $0x20] sm:$0xff]
    %v99 = vld [vmem:[#allocation7 + $0x28] sm:$0xff]
    %v100 = vld [vmem:[#allocation7 + $0x30] sm:$0xff]
    %v101 = vld [vmem:[#allocation7 + $0x38] sm:$0xff]
    %v102 = vld [vmem:[#allocation7 + $0x40] sm:$0xff]
    %v103 = vld [vmem:[#allocation7 + $0x48] sm:$0xff]
    %v104 = vld [vmem:[#allocation7 + $0x50] sm:$0xff]
    %v105 = vld [vmem:[#allocation7 + $0x58] sm:$0xff]
    %v106 = vld [vmem:[#allocation7 + $0x60] sm:$0xff]
    %v107 = vld [vmem:[#allocation7 + $0x68] sm:$0xff]
    %v108 = vld [vmem:[#allocation7 + $0x70] sm:$0xff]
    %v109 = vld [vmem:[#allocation7 + $0x78] sm:$0xff]
    %v110 = vld [vmem:[%s3] sm:$0x1]
    %v112 = vlaneseq
    %v113 = vshrl.u32 %v112, 7
    %v114 = vsub.s32 0, %v113
    %v115 = vrot.slane %v110, %v114
    %117 = vmatprep.subr.mxu0 0.0
    %118 = vmatpush1.msra.mxu0 %v94
    %119 = vmatprep.subr.mxu0 0.0
    %120 = vmatpush1.msra.mxu0 %v95
    %121 = vmatprep.subr.mxu0 0.0
    %122 = vmatpush1.msra.mxu0 %v96
    %123 = vmatprep.subr.mxu0 0.0
    %124 = vmatpush1.msra.mxu0 %v97
    %125 = vmatprep.subr.mxu0 0.0
    %126 = vmatpush1.msra.mxu0 %v98
    %127 = vmatprep.subr.mxu0 0.0
    %128 = vmatpush1.msra.mxu0 %v99
    %129 = vmatprep.subr.mxu0 0.0
    %130 = vmatpush1.msra.mxu0 %v100
    %131 = vmatprep.subr.mxu0 0.0
    %132 = vmatpush1.msra.mxu0 %v101
    %133 = vmatprep.subr.mxu0 0.0
    %134 = vmatpush1.msra.mxu0 %v102
    %135 = vmatprep.subr.mxu0 0.0
    %136 = vmatpush1.msra.mxu0 %v103
    %137 = vmatprep.subr.mxu0 0.0
    %138 = vmatpush1.msra.mxu0 %v104
    %139 = vmatprep.subr.mxu0 0.0
    %140 = vmatpush1.msra.mxu0 %v105
    %141 = vmatprep.subr.mxu0 0.0
    %142 = vmatpush1.msra.mxu0 %v106
    %143 = vmatprep.subr.mxu0 0.0
    %144 = vmatpush1.msra.mxu0 %v107
    %145 = vmatprep.subr.mxu0 0.0
    %146 = vmatpush1.msra.mxu0 %v108
    %147 = vmatprep.subr.mxu0 0.0
    %148 = vmatpush1.msra.mxu0 %v109
    %149 = vmatprep.subr.mxu0 0.0
    %150 = vmatpush1.msra.mxu0 0.0
    %151 = vmatprep.subr.mxu0 0.0
    %152 = vmatpush1.msra.mxu0 0.0
    %153 = vmatprep.subr.mxu0 0.0
    %154 = vmatpush1.msra.mxu0 0.0
    %155 = vmatprep.subr.mxu0 0.0
    %156 = vmatpush1.msra.mxu0 0.0
    %157 = vmatprep.subr.mxu0 0.0
    %158 = vmatpush1.msra.mxu0 0.0
    %159 = vmatprep.subr.mxu0 0.0
    %160 = vmatpush1.msra.mxu0 0.0
    %161 = vmatprep.subr.mxu0 0.0
    %162 = vmatpush1.msra.mxu0 0.0
    %163 = vmatprep.subr.mxu0 0.0
    %164 = vmatpush1.msra.mxu0 0.0
    %165 = vmatprep.subr.mxu0 0.0
    %166 = vmatpush1.msra.mxu0 0.0
    %167 = vmatprep.subr.mxu0 0.0
    %168 = vmatpush1.msra.mxu0 0.0
    %169 = vmatprep.subr.mxu0 0.0
    %170 = vmatpush1.msra.mxu0 0.0
    %171 = vmatprep.subr.mxu0 0.0
    %172 = vmatpush1.msra.mxu0 0.0
    %173 = vmatprep.subr.mxu0 0.0
    %174 = vmatpush1.msra.mxu0 0.0
    %175 = vmatprep.subr.mxu0 0.0
    %176 = vmatpush1.msra.mxu0 0.0
    %177 = vmatprep.subr.mxu0 0.0
    %178 = vmatpush1.msra.mxu0 0.0
    %179 = vmatprep.subr.mxu0 0.0
    %180 = vmatpush1.msra.mxu0 0.0
    %181 = vmatprep.mubr.f32.mxu0 0.0
    %182 = vmatmul.mubr.f32.gmra.mrb[0].mxu0 %v90
    %v183 = vpop.f32.mrb[0].mxu0
    %v184 = vadd.f32 %v115, %v183
    %v185 = vpop.f32.mrb[0].mxu0
    %186 = vmatprep.mubr.f32.mxu0 0.0
    %187 = vmatmul.mubr.f32.gmra.mrb[0].mxu0 %v91
    %v188 = vpop.f32.mrb[0].mxu0
    %v189 = vadd.f32 %v115, %v188
    %v190 = vpop.f32.mrb[0].mxu0
    %191 = vmatprep.mubr.f32.mxu0 0.0
    %192 = vmatmul.mubr.f32.gmra.mrb[0].mxu0 %v92
    %v193 = vpop.f32.mrb[0].mxu0
    %v194 = vadd.f32 %v115, %v193
    %v195 = vpop.f32.mrb[0].mxu0
    %196 = vmatprep.mubr.f32.mxu0 0.0
    %197 = vmatmul.mubr.f32.gmra.mrb[0].mxu0 %v93
    %v198 = vpop.f32.mrb[0].mxu0
    %v199 = vadd.f32 %v115, %v198
    %v200 = vpop.f32.mrb[0].mxu0
    %201 = vdwg.mxu0
    %v202 = vxor.u32 %v184, 2147483648
    %v203 = vxor.u32 %v189, 2147483648
    %v204 = vxor.u32 %v194, 2147483648
    %v205 = vxor.u32 %v199, 2147483648
    %v206 = vmul.f32 %v202, 1.442695
    %v207 = vpow.pop %v206
    %v208 = vmul.f32 %v203, 1.442695
    %v209 = vpow.pop %v208
    %v210 = vmul.f32 %v204, 1.442695
    %v211 = vpow.pop %v210
    %v212 = vmul.f32 %v205, 1.442695
    %v213 = vpow.pop %v212
    %v214 = vadd.f32 %v207, 1.0
    %v215 = vadd.f32 %v209, 1.0
    %v216 = vadd.f32 %v211, 1.0
    %v217 = vadd.f32 %v213, 1.0
    %v218 = vrcp.pop %v214
    %v219 = vmul.f32 1.0, %v218
    %v220 = vrcp.pop %v215
    %v221 = vmul.f32 1.0, %v220
    %v222 = vrcp.pop %v216
    %v223 = vmul.f32 1.0, %v222
    %v224 = vrcp.pop %v217
    %v225 = vmul.f32 1.0, %v224
    %v226 = vld [vmem:[#allocation8] sm:$0xff]
    %v227 = vld [vmem:[#allocation8 + $0x8] sm:$0xff]
    %v228 = vld [vmem:[#allocation8 + $0x10] sm:$0xff]
    %v229 = vld [vmem:[#allocation8 + $0x18] sm:$0xff]
    %v230 = vld [vmem:[#allocation8 + $0x20] sm:$0xff]
    %v231 = vld [vmem:[#allocation8 + $0x28] sm:$0xff]
    %v232 = vld [vmem:[#allocation8 + $0x30] sm:$0xff]
    %v233 = vld [vmem:[#allocation8 + $0x38] sm:$0xff]
    %v234 = vld [vmem:[#allocation8 + $0x40] sm:$0xff]
    %v235 = vld [vmem:[#allocation8 + $0x48] sm:$0xff]
    %v236 = vld [vmem:[#allocation8 + $0x50] sm:$0xff]
    %v237 = vld [vmem:[#allocation8 + $0x58] sm:$0xff]
    %v238 = vld [vmem:[#allocation8 + $0x60] sm:$0xff]
    %v239 = vld [vmem:[#allocation8 + $0x68] sm:$0xff]
    %v240 = vld [vmem:[#allocation8 + $0x70] sm:$0xff]
    %v241 = vld [vmem:[#allocation8 + $0x78] sm:$0xff]
    %v242 = vld [vmem:[%s5] sm:$0x1]
    %v244 = vlaneseq
    %v245 = vshrl.u32 %v244, 7
    %v246 = vsub.s32 0, %v245
    %v247 = vrot.slane %v242, %v246
    %249 = vmatprep.subr.mxu0 0.0
    %250 = vmatpush1.msra.mxu0 %v226
    %251 = vmatprep.subr.mxu0 0.0
    %252 = vmatpush1.msra.mxu0 %v227
    %253 = vmatprep.subr.mxu0 0.0
    %254 = vmatpush1.msra.mxu0 %v228
    %255 = vmatprep.subr.mxu0 0.0
    %256 = vmatpush1.msra.mxu0 %v229
    %257 = vmatprep.subr.mxu0 0.0
    %258 = vmatpush1.msra.mxu0 %v230
    %259 = vmatprep.subr.mxu0 0.0
    %260 = vmatpush1.msra.mxu0 %v231
    %261 = vmatprep.subr.mxu0 0.0
    %262 = vmatpush1.msra.mxu0 %v232
    %263 = vmatprep.subr.mxu0 0.0
    %264 = vmatpush1.msra.mxu0 %v233
    %265 = vmatprep.subr.mxu0 0.0
    %266 = vmatpush1.msra.mxu0 %v234
    %267 = vmatprep.subr.mxu0 0.0
    %268 = vmatpush1.msra.mxu0 %v235
    %269 = vmatprep.subr.mxu0 0.0
    %270 = vmatpush1.msra.mxu0 %v236
    %271 = vmatprep.subr.mxu0 0.0
    %272 = vmatpush1.msra.mxu0 %v237
    %273 = vmatprep.subr.mxu0 0.0
    %274 = vmatpush1.msra.mxu0 %v238
    %275 = vmatprep.subr.mxu0 0.0
    %276 = vmatpush1.msra.mxu0 %v239
    %277 = vmatprep.subr.mxu0 0.0
    %278 = vmatpush1.msra.mxu0 %v240
    %279 = vmatprep.subr.mxu0 0.0
    %280 = vmatpush1.msra.mxu0 %v241
    %281 = vmatprep.subr.mxu0 0.0
    %282 = vmatpush1.msra.mxu0 0.0
    %283 = vmatprep.subr.mxu0 0.0
    %284 = vmatpush1.msra.mxu0 0.0
    %285 = vmatprep.subr.mxu0 0.0
    %286 = vmatpush1.msra.mxu0 0.0
    %287 = vmatprep.subr.mxu0 0.0
    %288 = vmatpush1.msra.mxu0 0.0
    %289 = vmatprep.subr.mxu0 0.0
    %290 = vmatpush1.msra.mxu0 0.0
    %291 = vmatprep.subr.mxu0 0.0
    %292 = vmatpush1.msra.mxu0 0.0
    %293 = vmatprep.subr.mxu0 0.0
    %294 = vmatpush1.msra.mxu0 0.0
    %295 = vmatprep.subr.mxu0 0.0
    %296 = vmatpush1.msra.mxu0 0.0
    %297 = vmatprep.subr.mxu0 0.0
    %298 = vmatpush1.msra.mxu0 0.0
    %299 = vmatprep.subr.mxu0 0.0
    %300 = vmatpush1.msra.mxu0 0.0
    %301 = vmatprep.subr.mxu0 0.0
    %302 = vmatpush1.msra.mxu0 0.0
    %303 = vmatprep.subr.mxu0 0.0
    %304 = vmatpush1.msra.mxu0 0.0
    %305 = vmatprep.subr.mxu0 0.0
    %306 = vmatpush1.msra.mxu0 0.0
    %307 = vmatprep.subr.mxu0 0.0
    %308 = vmatpush1.msra.mxu0 0.0
    %309 = vmatprep.subr.mxu0 0.0
    %310 = vmatpush1.msra.mxu0 0.0
    %311 = vmatprep.subr.mxu0 0.0
    %312 = vmatpush1.msra.mxu0 0.0
    %313 = vmatprep.mubr.f32.mxu0 0.0
    %314 = vmatmul.mubr.f32.gmra.mrb[0].mxu0 %v219
    %v315 = vpop.f32.mrb[0].mxu0
    %v316 = vadd.f32 %v247, %v315
    %v317 = vpop.f32.mrb[0].mxu0
    %318 = vmatprep.mubr.f32.mxu0 0.0
    %319 = vmatmul.mubr.f32.gmra.mrb[0].mxu0 %v221
    %v320 = vpop.f32.mrb[0].mxu0
    %v321 = vadd.f32 %v247, %v320
    %v322 = vpop.f32.mrb[0].mxu0
    %323 = vmatprep.mubr.f32.mxu0 0.0
    %324 = vmatmul.mubr.f32.gmra.mrb[0].mxu0 %v223
    %v325 = vpop.f32.mrb[0].mxu0
    %v326 = vadd.f32 %v247, %v325
    %v327 = vpop.f32.mrb[0].mxu0
    %328 = vmatprep.mubr.f32.mxu0 0.0
    %329 = vmatmul.mubr.f32.gmra.mrb[0].mxu0 %v225
    %v330 = vpop.f32.mrb[0].mxu0
    %v331 = vadd.f32 %v247, %v330
    %v332 = vpop.f32.mrb[0].mxu0
    %333 = vdwg.mxu0
    %v334 = vxor.u32 %v316, 2147483648
    %v335 = vxor.u32 %v321, 2147483648
    %v336 = vxor.u32 %v326, 2147483648
    %v337 = vxor.u32 %v331, 2147483648
    %v338 = vmul.f32 %v334, 1.442695
    %v339 = vpow.pop %v338
    %v340 = vmul.f32 %v335, 1.442695
    %v341 = vpow.pop %v340
    %v342 = vmul.f32 %v336, 1.442695
    %v343 = vpow.pop %v342
    %v344 = vmul.f32 %v337, 1.442695
    %v345 = vpow.pop %v344
    %v346 = vadd.f32 %v339, 1.0
    %v347 = vadd.f32 %v341, 1.0
    %v348 = vadd.f32 %v343, 1.0
    %v349 = vadd.f32 %v345, 1.0
    %v350 = vrcp.pop %v346
    %v351 = vmul.f32 1.0, %v350
    %v352 = vrcp.pop %v347
    %v353 = vmul.f32 1.0, %v352
    %v354 = vrcp.pop %v348
    %v355 = vmul.f32 1.0, %v354
    %v356 = vrcp.pop %v349
    %v357 = vmul.f32 1.0, %v356
    %358 = vst [vmem:[#allocation10] sm:$0xff] %v351
    %359 = vst [vmem:[#allocation10 + $0x8] sm:$0xff] %v353
    %360 = vst [vmem:[#allocation10 + $0x10] sm:$0xff] %v355
    %361 = vst [vmem:[#allocation10 + $0x18] sm:$0xff] %v357
    // Predicated region
    $region42: #{tpu_custom_call.1} parent=1 // pred_check
      _
    $region43: #{tpu_custom_call.1} parent=1 // pred_check_branch
      %363 = sbr.rel (0) target = $region45
    $region44: #{tpu_custom_call.1} parent=1 // pred_region
      %s365 = ssub.s32 512, 512
      %366 = vsyncadd [#allocation4], %s365
      %s367 = sshll.u32 [#allocation10], 4
      %s368 = int_to_ptr.vmem [resolvable:$true] %s367
      %373 = dma.vmem_to_hbm [thread:$0]  %s368, 512, %s6, [#allocation4], 128, 128, 8
    $region45: #{tpu_custom_call.1} parent=1 // pred_fallthru
      _
    // Predicated region
    $region46: #{tpu_custom_call.1} parent=1 // pred_check
      _
    $region47: #{tpu_custom_call.1} parent=1 // pred_check_branch
      %375 = sbr.rel (0) target = $region49
    $region48: #{tpu_custom_call.1} parent=1 // pred_region
      %376 = dma.done [#allocation4], 512
    $region49: #{tpu_custom_call.1} parent=1 // pred_fallthru
      _
    %377 = vsyncpa [#allocation3], 1
    %378 = vsyncpa [#allocation6], 1
    %379 = vsyncpa [#allocation9], 1
    %380 = vsyncpa [#allocation4], 1

</llo_original>
